<compile_context>
chip_gen: v5e
topology: v5e:2x2
jax: 0.10.0
libtpu: 0.0.40
codegen_flags: <defaults>
</compile_context>

<pallas_src>
import functools
import math

import jax
import jax.numpy as jnp
from jax import lax
from jax.experimental import pallas as pl
from jax.experimental.pallas import tpu as pltpu

# ----------------------- config (mirrors EmbeddingBase.__init__) --------------
CONFIG = dict(
    num_elements=10,
    hidden_irreps="32x0e + 32x1o",      # -> 32 scalar (0e) channels out of node_embedding
    r_max=5.0,
    num_bessel=8,
    num_polynomial_cutoff=5,
    radial_type="bessel",
    distance_transform=None,
    max_ell=2,
    orbitals=None,
    nr_bits=10,                         # one-hot width == num_elements
)
HIDDEN_SCALARS = 32                      # hidden_irreps.count(Irrep(0,1))
SH_DIM = (CONFIG["max_ell"] + 1) ** 2    # 9 for max_ell = 2
NUM_BESSEL = CONFIG["num_bessel"]
NUM_ELEMENTS = CONFIG["num_elements"]

LANE = 128

# Write-bound outputs -> bf16 halves HBM writeback.  one_hot is exact (0/1).
# Flip to jnp.float32 if a downstream interaction block cannot take bf16.
OUT_DTYPE = jnp.bfloat16


def _cdiv(a, b):
    return -(-a // b)


def _round_up(n, m):
    return _cdiv(n, m) * m


def _generation_limits():
    """(max block lanes, vmem limit bytes) — generation aware (v5e/v6e vs v7x)."""
    try:
        vmem_bytes = int(pltpu.get_tpu_info().vmem_capacity_bytes)
    except Exception:
        try:
            kind = jax.devices()[0].device_kind.lower()
            vmem_bytes = 64 * 2**20 if "7" in kind else 128 * 2**20
        except Exception:
            vmem_bytes = 64 * 2**20                 # conservative default
    if vmem_bytes <= 64 * 2**20:                    # v7x: 64 MiB VMEM per TC
        return 32768, 48 * 2**20
    return 65536, 100 * 2**20                       # v5e / v6e: 128 MiB VMEM


_MAX_BLOCK, _VMEM_LIMIT = _generation_limits()
_COMPILER_PARAMS = pltpu.CompilerParams(
    dimension_semantics=("parallel",),
    vmem_limit_bytes=_VMEM_LIMIT,
)


def _pick_block(n):
    """Rows-per-tile (lane axis): multiple of 128, capped generation-aware,
    aiming for >=4 grid steps so megacore sharding + double-buffering never
    collapse to a single grid iteration on mid-size graphs."""
    n = max(int(n), 1)
    whole = _round_up(n, LANE)                      # single-step upper bound
    quarter = _round_up(_cdiv(n, 4), LANE)          # >=4 steps when possible
    return min(_MAX_BLOCK, whole, quarter)


# ------------------------------- node kernel ----------------------------------
def _node_kernel(z_ref, wt_ref, onehot_ref, feats_ref):
    """Lane-dense one_hot^T(Z) and node_feats^T = W^T @ one_hot^T."""
    e, b = onehot_ref.shape
    row = lax.broadcasted_iota(jnp.int32, (e, b), 0)           # element id per sublane
    onehot = (z_ref[...] == row).astype(jnp.float32)           # [E, B] lane-dense
    onehot_ref[...] = onehot.astype(onehot_ref.dtype)          # 0/1 exact in bf16
    # Tiny K=10 contraction; kernel is store-bound so MXU shape is a non-issue.
    # Default precision is fine: multiplying the bf16-rounded weights by an
    # exact 0/1 one-hot and casting to bf16 equals HIGHEST + bf16 cast.
    feats = jnp.dot(wt_ref[...], onehot, preferred_element_type=jnp.float32)
    feats_ref[...] = feats.astype(feats_ref.dtype)


def node_embedding_pallas(z_idx, w_scaled):
    """z_idx: [N] int element indices.  w_scaled: [E, H] path-normalized weight.
    Returns lane-dense one_hot^T [E, N] and node_feats^T [H, N] in OUT_DTYPE."""
    n = int(z_idx.shape[0])
    e, h = w_scaled.shape
    blk = _pick_block(n)
    z2d = z_idx.astype(jnp.int32).reshape(1, n)                # no pad copy
    wt = jnp.transpose(w_scaled).astype(jnp.float32)           # [H, E] (tiny)

    onehot_t, feats_t = pl.pallas_call(
        _node_kernel,
        out_shape=(jax.ShapeDtypeStruct((e, n), OUT_DTYPE),
                   jax.ShapeDtypeStruct((h, n), OUT_DTYPE)),
        grid=(_cdiv(n, blk),),                                 # ragged tail handled by Pallas
        in_specs=[pl.BlockSpec((1, blk), lambda i: (0, i)),
                  pl.BlockSpec((h, e), lambda i: (0, 0))],
        out_specs=(pl.BlockSpec((e, blk), lambda i: (0, i)),
                   pl.BlockSpec((h, blk), lambda i: (0, i))),
        compiler_params=_COMPILER_PARAMS,
    )(z2d, wt)
    return onehot_t, feats_t


# ------------------------------- edge kernel ----------------------------------
def _edge_kernel(vec_ref, rad_ref, ang_ref, *, dense_store):
    """Edge lengths, Bessel * polynomial-cutoff radial basis, real SH (l<=2)."""
    v = vec_ref[...]                                           # [3, B] lane-dense
    x = v[0:1, :]
    y = v[1:2, :]
    z = v[2:3, :]

    r2 = x * x + y * y + z * z                                 # [1, B]
    rinv = lax.rsqrt(jnp.maximum(r2, 1e-24))                   # eps-guard: basis == 0 at r=0
    r = r2 * rinv                                              # == sqrt(r2)

    # --- angular embedding: e3nn real SH, normalize=True, 'component' norm ---
    xn = x * rinv
    yn = y * rinv
    zn = z * rinv
    s3 = math.sqrt(3.0)
    s5 = math.sqrt(5.0)
    s15 = math.sqrt(15.0)
    sh_rows = [
        jnp.ones_like(xn),                                     # l = 0
        s3 * xn, s3 * yn, s3 * zn,                             # l = 1
        s15 * xn * zn,                                         # l = 2
        s15 * xn * yn,
        s5 * (yn * yn - 0.5 * (xn * xn + zn * zn)),
        s15 * yn * zn,
        (0.5 * s15) * (zn * zn - xn * xn),
    ]

    # --- radial embedding: Bessel via sin/cos recurrence + polynomial cutoff ---
    r_max = CONFIG["r_max"]
    p = CONFIG["num_polynomial_cutoff"]
    nb = rad_ref.shape[0]
    theta = (math.pi / r_max) * r
    s1 = jnp.sin(theta)
    c2 = 2.0 * jnp.cos(theta)                                  # only 1 sin + 1 cos total
    sines = [s1]
    s_km2 = jnp.zeros_like(s1)                                 # sin(0*theta)
    s_km1 = s1
    for _ in range(nb - 1):                                    # sin(kθ)=2cos(θ)sin((k-1)θ)-sin((k-2)θ)
        s_k = c2 * s_km1 - s_km2
        sines.append(s_k)
        s_km2, s_km1 = s_km1, s_k

    u = r * (1.0 / r_max)
    up = u
    for _ in range(p - 1):                                     # u**p
        up = up * u
    up1 = up * u
    up2 = up1 * u
    env = (1.0
           - ((p + 1.0) * (p + 2.0) / 2.0) * up
           + (p * (p + 2.0)) * up1
           - (p * (p + 1.0) / 2.0) * up2)
    env = jnp.where(r < r_max, env, 0.0)                       # [1, B]
    scale = (math.sqrt(2.0 / r_max) * env) * rinv              # [1, B]

    if dense_store:
        # Pack rows in vregs (XLU is idle here) -> one dense store per output.
        ang_ref[...] = jnp.concatenate(sh_rows, axis=0).astype(ang_ref.dtype)
        rad_ref[...] = (jnp.concatenate(sines, axis=0) * scale).astype(rad_ref.dtype)
    else:
        # Fallback: per-row masked stores (always lowers; values identical).
        for i, row in enumerate(sh_rows):
            ang_ref[i:i + 1, :] = row.astype(ang_ref.dtype)
        for i, s_k in enumerate(sines):
            rad_ref[i:i + 1, :] = (s_k * scale).astype(rad_ref.dtype)


def edge_embedding_pallas(vectors_t):
    """vectors_t: lane-dense edge vectors [3, Ne].
    Returns lane-dense radial^T [NUM_BESSEL, Ne] and angular^T [SH_DIM, Ne]."""
    ne = int(vectors_t.shape[1])
    blk = _pick_block(ne)
    vec = vectors_t.astype(jnp.float32)

    def call(dense_store):
        return pl.pallas_call(
            functools.partial(_edge_kernel, dense_store=dense_store),
            out_shape=(jax.ShapeDtypeStruct((NUM_BESSEL, ne), OUT_DTYPE),
                       jax.ShapeDtypeStruct((SH_DIM, ne), OUT_DTYPE)),
            grid=(_cdiv(ne, blk),),                            # ragged tail handled by Pallas
            in_specs=[pl.BlockSpec((3, blk), lambda i: (0, i))],
            out_specs=(pl.BlockSpec((NUM_BESSEL, blk), lambda i: (0, i)),
                       pl.BlockSpec((SH_DIM, blk), lambda i: (0, i))),
            compiler_params=_COMPILER_PARAMS,
        )(vec)

    try:
        return call(dense_store=True)
    except Exception:
        # TODO(synk): drop this fallback once sublane-unaligned jnp.concatenate
        # is guaranteed by the installed Mosaic; it only changes how the output
        # block is assembled, not the values.
        return call(dense_store=False)


# ----------------------------- full forward pass -------------------------------
def embedding_base_forward(w_scaled, x_idx, pos, edge_index, shifts):
    """EmbeddingBase.forward.  All Pallas in/outputs are LANE-DENSE
    ([feat, rows]); use `to_module_layout` only where a consumer genuinely
    needs the PyTorch [rows, feat] convention (layout plumbing only)."""
    # TODO(synk): z_one_hot's orbital/bit packing is simplified to a plain
    # one-hot over element index (nr_bits == num_elements).
    one_hot_t, node_feats_t = node_embedding_pallas(x_idx, w_scaled)

    # glue: get_edge_vectors_and_lengths — the positions[edge_index] gather
    # stays in XLA, built directly in the lane-dense [3, Ne] layout.
    # TODO(synk): fuse the gather into the edge kernel (scalar-prefetched
    # edge_index + per-block DMA gather) if the ~24 B/edge round trip matters.
    sender = edge_index[0]
    receiver = edge_index[1]
    pos_t = jnp.transpose(pos).astype(jnp.float32)             # [3, N] (tiny)
    vectors_t = (pos_t[:, receiver] - pos_t[:, sender]
                 + jnp.transpose(shifts).astype(jnp.float32))  # [3, Ne]

    radial_t, angular_t = edge_embedding_pallas(vectors_t)

    return {
        "nodes": {"one_hot": one_hot_t, "node_features": node_feats_t},
        "edges": {"radial_embedding": radial_t, "angular_embedding": angular_t},
    }


def to_module_layout(embeddings):
    """Layout plumbing only: lane-dense [feat, rows] -> PyTorch [rows, feat]."""
    return jax.tree_util.tree_map(jnp.transpose, embeddings)


# ----------------------------------- main --------------------------------------
if __name__ == "__main__":
    key = jax.random.PRNGKey(0)
    k1, k2, k3, k4 = jax.random.split(key, 4)

    # Small, deliberately NOT multiples of 128 (exercises the ragged-tail path).
    N_NODES, N_EDGES = 300, 1000
    x_idx = jax.random.randint(k1, (N_NODES,), 0, NUM_ELEMENTS)
    pos = jax.random.normal(k2, (N_NODES, 3), jnp.float32) * 2.0
    src = jax.random.randint(k3, (N_EDGES,), 0, N_NODES)
    dst = (src + 1 + jax.random.randint(k4, (N_EDGES,), 0, N_NODES - 1)) % N_NODES
    edge_index = jnp.stack([src, dst])                         # [2, Ne]
    shifts = jnp.zeros((N_EDGES, 3), jnp.float32)

    # deterministic o3.Linear internal weights + e3nn path normalization
    w = jax.random.normal(jax.random.PRNGKey(42),
                          (NUM_ELEMENTS, HIDDEN_SCALARS), jnp.float32)
    w_scaled = w / math.sqrt(NUM_ELEMENTS)

    out = embedding_base_forward(w_scaled, x_idx, pos, edge_index, shifts)
    out = jax.tree_util.tree_map(jax.block_until_ready, out)

    # lane-dense output shapes ([feat, rows])
    assert out["nodes"]["one_hot"].shape == (NUM_ELEMENTS, N_NODES)
    assert out["nodes"]["node_features"].shape == (HIDDEN_SCALARS, N_NODES)
    assert out["edges"]["radial_embedding"].shape == (NUM_BESSEL, N_EDGES)
    assert out["edges"]["angular_embedding"].shape == (SH_DIM, N_EDGES)

    # value check against a tiny pure-JAX reference (module [rows, feat] layout)
    rm = to_module_layout(out)
    onehot_ref = jax.nn.one_hot(x_idx, NUM_ELEMENTS, dtype=jnp.float32)
    feats_ref = onehot_ref @ w_scaled
    vec_ref = pos[edge_index[1]] - pos[edge_index[0]] + shifts
    r_ref = jnp.linalg.norm(vec_ref, axis=-1, keepdims=True)
    r_max, p = CONFIG["r_max"], CONFIG["num_polynomial_cutoff"]
    kfreq = jnp.arange(1, NUM_BESSEL + 1, dtype=jnp.float32)[None, :]
    bessel = math.sqrt(2.0 / r_max) * jnp.sin(kfreq * math.pi * r_ref / r_max) / r_ref
    u = r_ref / r_max
    env = (1.0 - (p + 1) * (p + 2) / 2 * u ** p + p * (p + 2) * u ** (p + 1)
           - p * (p + 1) / 2 * u ** (p + 2)) * (r_ref < r_max)
    radial_ref = bessel * env
    nv = vec_ref / r_ref
    xr, yr, zr = nv[:, 0], nv[:, 1], nv[:, 2]
    s3, s5, s15 = math.sqrt(3.0), math.sqrt(5.0), math.sqrt(15.0)
    angular_ref = jnp.stack(
        [jnp.ones_like(xr), s3 * xr, s3 * yr, s3 * zr,
         s15 * xr * zr, s15 * xr * yr,
         s5 * (yr * yr - 0.5 * (xr * xr + zr * zr)),
         s15 * yr * zr, 0.5 * s15 * (zr * zr - xr * xr)], axis=-1)

    def _max_err(a, b):
        return float(jnp.max(jnp.abs(a.astype(jnp.float32) - b)))

    assert _max_err(rm["nodes"]["one_hot"], onehot_ref) < 1e-6
    assert _max_err(rm["nodes"]["node_features"], feats_ref) < 2e-2
    assert _max_err(rm["edges"]["radial_embedding"], radial_ref) < 2e-2
    assert _max_err(rm["edges"]["angular_embedding"], angular_ref) < 3e-2
    assert bool(jnp.all(jnp.isfinite(
        rm["edges"]["radial_embedding"].astype(jnp.float32))))
    assert bool(jnp.all(jnp.isfinite(
        rm["edges"]["angular_embedding"].astype(jnp.float32))))

    print("KERNEL_OK")
</pallas_src>

<mosaic_0001>
module attributes {stable_mosaic.version = 11 : i64} {
  func.func @_node_kernel(%arg0: i32, %arg1: memref<1x128xi32, #tpu.memory_space<vmem>>, %arg2: memref<32x10xf32, #tpu.memory_space<vmem>>, %arg3: memref<10x128xbf16, #tpu.memory_space<vmem>>, %arg4: memref<32x128xbf16, #tpu.memory_space<vmem>>) attributes {dimension_semantics = [#tpu.dimension_semantics<parallel>], iteration_bounds = array<i64: 3>, scalar_prefetch = 0 : i64, scratch_operands = 0 : i64, tpu.core_type = #tpu.core_type<tc>, window_params = [{transform_indices = @transform_0, window_bounds = array<i64: 1, 128>}, {pipeline_mode = #tpu.pipeline_mode<synchronous>, transform_indices = @transform_1, window_bounds = array<i64: 32, 10>}, {transform_indices = @transform_2, window_bounds = array<i64: 10, 128>}, {transform_indices = @transform_3, window_bounds = array<i64: 32, 128>}]} {
    %0 = tpu.iota {dimensions = array<i32: 0>} : vector<10x128xi32>
    %c0 = arith.constant 0 : index
    %c0_0 = arith.constant 0 : index
    %1 = vector.load %arg1[%c0, %c0_0] : memref<1x128xi32, #tpu.memory_space<vmem>>, vector<1x128xi32>
    %2 = vector.broadcast %1 : vector<1x128xi32> to vector<10x128xi32>
    %3 = arith.cmpi eq, %2, %0 : vector<10x128xi32>
    %4 = arith.extui %3 : vector<10x128xi1> to vector<10x128xi32>
    %5 = arith.sitofp %4 : vector<10x128xi32> to vector<10x128xf32>
    %6 = arith.truncf %5 : vector<10x128xf32> to vector<10x128xbf16>
    %c0_1 = arith.constant 0 : index
    %c0_2 = arith.constant 0 : index
    %7 = vector.load %arg3[%c0_1, %c0_2] : memref<10x128xbf16, #tpu.memory_space<vmem>>, vector<10x128xbf16>
    tpu.vector_store %arg3[%c0_1, %c0_2], %6 {strides = array<i32>} : memref<10x128xbf16, #tpu.memory_space<vmem>>, vector<10x128xbf16>,
    %c0_3 = arith.constant 0 : index
    %c0_4 = arith.constant 0 : index
    %8 = vector.load %arg2[%c0_3, %c0_4] : memref<32x10xf32, #tpu.memory_space<vmem>>, vector<32x10xf32>
    %cst = arith.constant dense<0.000000e+00> : vector<32x128xf32>
    %9 = tpu.matmul %8, %5, %cst {dimension_numbers = #tpu.dot_dimension_numbers<[1], [0], [0], [1], [0, 0, 1, 1], [], []>} : vector<32x10xf32>, vector<10x128xf32>, vector<32x128xf32> -> vector<32x128xf32>
    %10 = arith.truncf %9 : vector<32x128xf32> to vector<32x128xbf16>
    %c0_5 = arith.constant 0 : index
    %c0_6 = arith.constant 0 : index
    %11 = vector.load %arg4[%c0_5, %c0_6] : memref<32x128xbf16, #tpu.memory_space<vmem>>, vector<32x128xbf16>
    tpu.vector_store %arg4[%c0_5, %c0_6], %10 {strides = array<i32>} : memref<32x128xbf16, #tpu.memory_space<vmem>>, vector<32x128xbf16>,
    return
  }
  func.func @transform_0(%arg0: i32) -> (i32, i32) {
    %c0_i32 = arith.constant 0 : i32
    %c0_i32_0 = arith.constant 0 : i32
    return %c0_i32, %arg0 : i32, i32
  }
  func.func @transform_1(%arg0: i32) -> (i32, i32) {
    %c0_i32 = arith.constant 0 : i32
    %c0_i32_0 = arith.constant 0 : i32
    %c0_i32_1 = arith.constant 0 : i32
    return %c0_i32, %c0_i32_0 : i32, i32
  }
  func.func @transform_2(%arg0: i32) -> (i32, i32) {
    %c0_i32 = arith.constant 0 : i32
    %c0_i32_0 = arith.constant 0 : i32
    return %c0_i32, %arg0 : i32, i32
  }
  func.func @transform_3(%arg0: i32) -> (i32, i32) {
    %c0_i32 = arith.constant 0 : i32
    %c0_i32_0 = arith.constant 0 : i32
    return %c0_i32, %arg0 : i32, i32
  }
}

</mosaic_0001>

<llo_original>
// kernel: tpu_custom_call.1
$region0: #{tpu_custom_call.1}
  #allocation0 [shape = 'u32[]', space=smem, size = 0x4, offset = 0x4, fixed_abs, tag = 'smem constant byte address 0x4 - core index']
  #allocation1 [shape = 'u32[72,128]{1,0:T(1,128)}', space=vmem, size = 0x9000, scoped, tag = 'internal scratch']
  %s0 = inlined_call_operand.vmem [shape: s32[1,300], index: 0, kind: input, shape index: {}]
  %s1 = inlined_call_operand.vmem [shape: f32[32,10], index: 1, kind: input, shape index: {}]
  %s2 = inlined_call_operand.hbm [shape: bf16[10,300], index: 2, kind: output, shape index: {0}]
  %s3 = inlined_call_operand.hbm [shape: bf16[32,300], index: 3, kind: output, shape index: {1}]
  %4 = xla_tuple %s2, %s3
  %s5 = sld [smem:[#allocation0]]
  $region49: #{tpu_custom_call.1} parent=0
    _
  %s7 = ssub.s32 1, %s5
  %s8 = scalar_select 0, %s7, %s5
  $region1: #{tpu_custom_call.1} parent=0
    #allocation2 [shape = 'u8[8192]{0}', space=vmem, size = 0x2000, scoped, tag = 'output window, operand 0']
    #allocation3 [shape = 's32[2]{0}', space=sflag, size = 0x8, scoped, tag = 'scoped memory for tpu_custom_call.1']
    #allocation4 [shape = 'u8[16384]{0}', space=vmem, size = 0x4000, scoped, tag = 'output window, operand 1']
    #allocation5 [shape = 's32[2]{0}', space=sflag, size = 0x8, scoped, tag = 'scoped memory for tpu_custom_call.1']
    %9 = vsyncpa [#allocation3], 0
    %s10 = scalar_lea.sflag [#allocation3], 1
    %11 = vsyncpa %s10, 0
    %12 = vsyncpa [#allocation5], 0
    %s13 = scalar_lea.sflag [#allocation5], 1
    %14 = vsyncpa %s13, 0
    loop: start=0, step=1, limit=5
    $region2: #{tpu_custom_call.1} parent=1 // loop_pre_header
      _
    $region3: #{tpu_custom_call.1} parent=1 // loop_header
      %s16 = sphi 0, %s20
      %p17 = scmp.ge.s32.totalorder %s16, 5
      %s26 = sphi 0, %s28
      %s29 = sphi 0, %s26
      %s30 = sphi 0, %s29
      %s46 = sphi 0, %s30
      %s50 = sphi 0, %s50
      %s52 = sphi 0, %s50
      %s53 = sphi 0, %s52
      %s67 = sphi 0, %s53
      %s73 = sphi 0, %s75
      %s76 = sphi 0, %s73
      %s77 = sphi 0, %s76
      %s93 = sphi 0, %s77
      %s99 = sphi 0, %s101
      %s102 = sphi 0, %s99
      %s103 = sphi 0, %s102
      %s119 = sphi 0, %s103
    $region4: #{tpu_custom_call.1} parent=1 // loop_header_branch
      %19 = sbr.rel (%p17) target = $region8
    $region5: #{tpu_custom_call.1} parent=1 // loop_body
      %s21 = ssub.s32 %s16, 1
      %s22 = ssub.s32 %s16, 2
      %s23 = sadd.s32 %s16, 1
      %s24 = ssub.s32 %s16, %s23
      %p25 = scmp.eq.s32.totalorder %s24, 0
      %s27 = sadd.s32 %s26, 1
      %s28 = scalar_select %p25, %s26, %s27
      %p31 = pneg %p25
      %p32 = scmp.eq.s32.totalorder %s16, 2
      %p33 = por %p31, %p32
      %p34 = scmp.ne.s32.totalorder %s26, %s29
      %p35 = scmp.eq.s32.totalorder %s16, 0
      %p36 = por %p34, %p35
      %p37 = scmp.ne.s32.totalorder %s26, %s29
      %p38 = scmp.eq.s32.totalorder %s21, 2
      %p39 = por %p37, %p38
      %p40 = scmp.ne.s32.totalorder %s29, %s30
      %p41 = scmp.eq.s32.totalorder %s21, 0
      %p42 = por %p40, %p41
      %p43 = scmp.ne.s32.totalorder %s29, %s30
      %p44 = scmp.eq.s32.totalorder %s22, 2
      %p45 = por %p43, %p44
      %p47 = scmp.ne.s32.totalorder %s30, %s46
      %p48 = scmp.eq.s32.totalorder %s22, 0
      %p49 = por %p47, %p48
      %s51 = sadd.s32 %s50, 1
      %p54 = scmp.eq.s32.totalorder %s16, 2
      %p55 = scmp.ne.s32.totalorder %s50, %s52
      %p56 = scmp.eq.s32.totalorder %s16, 0
      %p57 = por %p55, %p56
      %p58 = scmp.ne.s32.totalorder %s50, %s52
      %p59 = scmp.eq.s32.totalorder %s21, 2
      %p60 = por %p58, %p59
      %p61 = scmp.ne.s32.totalorder %s52, %s53
      %p62 = scmp.eq.s32.totalorder %s21, 0
      %p63 = por %p61, %p62
      %p64 = scmp.ne.s32.totalorder %s52, %s53
      %p65 = scmp.eq.s32.totalorder %s22, 2
      %p66 = por %p64, %p65
      %p68 = scmp.ne.s32.totalorder %s53, %s67
      %p69 = scmp.eq.s32.totalorder %s22, 0
      %p70 = por %p68, %p69
      %s71 = ssub.s32 %s16, %s23
      %p72 = scmp.eq.s32.totalorder %s71, 0
      %s74 = sadd.s32 %s73, 1
      %s75 = scalar_select %p72, %s73, %s74
      %p78 = pneg %p72
      %p79 = scmp.eq.s32.totalorder %s16, 2
      %p80 = por %p78, %p79
      %p81 = scmp.ne.s32.totalorder %s73, %s76
      %p82 = scmp.eq.s32.totalorder %s16, 0
      %p83 = por %p81, %p82
      %p84 = scmp.ne.s32.totalorder %s73, %s76
      %p85 = scmp.eq.s32.totalorder %s21, 2
      %p86 = por %p84, %p85
      %p87 = scmp.ne.s32.totalorder %s76, %s77
      %p88 = scmp.eq.s32.totalorder %s21, 0
      %p89 = por %p87, %p88
      %p90 = scmp.ne.s32.totalorder %s76, %s77
      %p91 = scmp.eq.s32.totalorder %s22, 2
      %p92 = por %p90, %p91
      %p94 = scmp.ne.s32.totalorder %s77, %s93
      %p95 = scmp.eq.s32.totalorder %s22, 0
      %p96 = por %p94, %p95
      %s97 = ssub.s32 %s16, %s23
      %p98 = scmp.eq.s32.totalorder %s97, 0
      %s100 = sadd.s32 %s99, 1
      %s101 = scalar_select %p98, %s99, %s100
      %p104 = pneg %p98
      %p105 = scmp.eq.s32.totalorder %s16, 2
      %p106 = por %p104, %p105
      %p107 = scmp.ne.s32.totalorder %s99, %s102
      %p108 = scmp.eq.s32.totalorder %s16, 0
      %p109 = por %p107, %p108
      %p110 = scmp.ne.s32.totalorder %s99, %s102
      %p111 = scmp.eq.s32.totalorder %s21, 2
      %p112 = por %p110, %p111
      %p113 = scmp.ne.s32.totalorder %s102, %s103
      %p114 = scmp.eq.s32.totalorder %s21, 0
      %p115 = por %p113, %p114
      %p116 = scmp.ne.s32.totalorder %s102, %s103
      %p117 = scmp.eq.s32.totalorder %s22, 2
      %p118 = por %p116, %p117
      %p120 = scmp.ne.s32.totalorder %s103, %s119
      %p121 = scmp.eq.s32.totalorder %s22, 0
      %p122 = por %p120, %p121
      %p123 = scmp.le.s32.totalorder 1, %s16
      %p124 = scmp.lt.s32.totalorder %s16, 4
      %p125 = pnand %p123, %p124
      %p126 = pneg %p125
      // Predicated region
      $region9: #{tpu_custom_call.1} parent=5 // pred_check
        _
      $region10: #{tpu_custom_call.1} parent=5 // pred_check_branch
        %128 = sbr.rel (%p125) target = $region12
      $region11: #{tpu_custom_call.1} parent=5 // pred_region
        %s129 = ssub.s32 %s16, 1
        // Predicated region
        $region13: #{tpu_custom_call.1} parent=11 // pred_check
          %p130 = pneg %p63
        $region14: #{tpu_custom_call.1} parent=11 // pred_check_branch
          %132 = sbr.rel (%p130) target = $region16
        $region15: #{tpu_custom_call.1} parent=11 // pred_region
          _
        $region16: #{tpu_custom_call.1} parent=11 // pred_fallthru
          _
      $region12: #{tpu_custom_call.1} parent=5 // pred_fallthru
        _
      %p133 = scmp.lt.s32.totalorder %s16, 3
      // Predicated region
      $region17: #{tpu_custom_call.1} parent=5 // pred_check
        %p134 = pneg %p133
      $region18: #{tpu_custom_call.1} parent=5 // pred_check_branch
        %136 = sbr.rel (%p134) target = $region20
      $region19: #{tpu_custom_call.1} parent=5 // pred_region
        // Predicated region
        $region21: #{tpu_custom_call.1} parent=19 // pred_check
          %p137 = pneg %p36
        $region22: #{tpu_custom_call.1} parent=19 // pred_check_branch
          %139 = sbr.rel (%p137) target = $region24
        $region23: #{tpu_custom_call.1} parent=19 // pred_region
          %p140 = scmp.lt.s32.totalorder %s16, 2
          %s141 = scalar_select %p140, %s16, 2
          %s142 = scalar_lea.vmem %s0, %s141
        $region24: #{tpu_custom_call.1} parent=19 // pred_fallthru
          _
      $region20: #{tpu_custom_call.1} parent=5 // pred_fallthru
        _
      %p143 = scmp.le.s32.totalorder 1, %s16
      %p144 = scmp.lt.s32.totalorder %s16, 4
      %p145 = pnand %p143, %p144
      %p146 = pneg %p145
      // Predicated region
      $region25: #{tpu_custom_call.1} parent=5 // pred_check
        _
      $region26: #{tpu_custom_call.1} parent=5 // pred_check_branch
        %148 = sbr.rel (%p145) target = $region28
      $region27: #{tpu_custom_call.1} parent=5 // pred_region
        %s149 = ssub.s32 %s16, 1
        %p150 = scmp.lt.s32.totalorder %s21, 2
        %s151 = scalar_select %p150, %s21, 2
        %s152 = scalar_lea.vmem %s0, %s151
        %p153 = pneg %p42
        %p154 = pneg %p39
        %p155 = pneg %p63
        %p156 = pneg %p60
        %p157 = pneg %p89
        %p158 = pneg %p86
        %s159 = sand.u32 %s76, 1
        %s160 = scalar_lea.sflag [#allocation3], %s159
        %s161 = sand.u32 %s76, 1
        %s162 = smul.addr %s161, 8
        %s163 = scalar_lea.vmem [#allocation2], %s162
        %p164 = pneg %p115
        %p165 = pneg %p112
        %s166 = sand.u32 %s102, 1
        %s167 = scalar_lea.sflag [#allocation5], %s166
        %s168 = sand.u32 %s102, 1
        %s169 = smul.addr %s168, 16
        %s170 = scalar_lea.vmem [#allocation4], %s169
        %p171 = scmp.lt.s32.totalorder %s21, 2
        %s172 = scalar_select %p171, %s21, 2
        %s173 = scalar_lea.vmem %s0, %s172
        %v174 = vlaneseq
        %v175 = vshrl.u32 %v174, 7
        %v176 = vadd.s32 %v175, 8
        %v177 = vld [vmem:[%s173] sm:$0x1]
        %v178 = vperm.slane %v177, 0
        %vm179 = vcmp.eq.s32.totalorder %v178, %v175
        %vm180 = vcmp.eq.s32.totalorder %v178, %v176
        %v181 = vsel %vm179, 1, 0
        %v182 = vsel %vm180, 1, 0
        %v183 = vcvt.s32.f32 %v181
        %v184 = vcvt.s32.f32 %v182
        %v185 = vpack.c.bf16 %v183, %v183
        %v186 = vpack.c.bf16 %v184, %v184
        %187 = vst [vmem:[%s163] sm:$0xf] %v185
        %188 = vst [vmem:[%s163 + $0x4] sm:$0x1] %v186
        %v189 = vld [vmem:[%s1] sm:$0xff]
        %v190 = vld [vmem:[%s1 + $0x8] sm:$0xff]
        %v191 = vld [vmem:[%s1 + $0x10] sm:$0xff]
        %v192 = vld [vmem:[%s1 + $0x18] sm:$0xff]
        %vm193 = vcmask 80896
        %v195 = vsel %vm193, %v189, 0
        %v198 = vsel %vm193, %v190, 0
        %v201 = vsel %vm193, %v191, 0
        %v204 = vsel %vm193, %v192, 0
        %vm206 = vcmask 1041408
        %v208 = vsel %vm206, %v184, 0
        %210 = vmatpush.msra.mxu0 0.0
        %211 = vmatpush.msra.mxu0 0.0
        %212 = vmatpush.msra.mxu0 0.0
        %213 = vmatpush.msra.mxu0 0.0
        %214 = vmatpush.msra.mxu0 0.0
        %215 = vmatpush.msra.mxu0 0.0
        %216 = vmatpush.msra.mxu0 0.0
        %217 = vmatpush.msra.mxu0 0.0
        %218 = vmatpush.msra.mxu0 0.0
        %219 = vmatpush.msra.mxu0 0.0
        %220 = vmatpush.msra.mxu0 0.0
        %221 = vmatpush.msra.mxu0 0.0
        %222 = vmatpush.msra.mxu0 0.0
        %223 = vmatpush.msra.mxu0 0.0
        %224 = vmatpush.msra.mxu0 %v208
        %225 = vmatpush.msra.mxu0 %v183
        %226 = vmatmul.f32.gmra.mxu0 %v195
        %v227 = vpop.f32.mrf.mxu0
        %v228 = vadd.f32 0.0, %v227
        %229 = vmatmul.f32.gmra.mxu0 %v198
        %v230 = vpop.f32.mrf.mxu0
        %v231 = vadd.f32 0.0, %v230
        %232 = vmatmul.f32.gmra.mxu0 %v201
        %v233 = vpop.f32.mrf.mxu0
        %v234 = vadd.f32 0.0, %v233
        %235 = vmatmul.f32.gmra.mxu0 %v204
        %v236 = vpop.f32.mrf.mxu0
        %v237 = vadd.f32 0.0, %v236
        %238 = vdwg.mxu0
        %v239 = vpack.c.bf16 %v228, %v228
        %v240 = vpack.c.bf16 %v231, %v231
        %v241 = vpack.c.bf16 %v234, %v234
        %v242 = vpack.c.bf16 %v237, %v237
        %243 = vst [vmem:[%s170] sm:$0xf] %v239
        %244 = vst [vmem:[%s170 + $0x4] sm:$0xf] %v240
        %245 = vst [vmem:[%s170 + $0x8] sm:$0xf] %v241
        %246 = vst [vmem:[%s170 + $0xc] sm:$0xf] %v242
        %s247 = sand.u32 %s76, 1
        %s248 = scalar_lea.sflag [#allocation3], %s247
        %s249 = sand.u32 %s76, 1
        %s250 = smul.addr %s249, 8
        %s251 = scalar_lea.vmem [#allocation2], %s250
        %s252 = sand.u32 %s102, 1
        %s253 = scalar_lea.sflag [#allocation5], %s252
        %s254 = sand.u32 %s102, 1
        %s255 = smul.addr %s254, 16
        %s256 = scalar_lea.vmem [#allocation4], %s255
        // Predicated region
        $region29: #{tpu_custom_call.1} parent=27 // pred_check
          %p257 = pneg %p86
        $region30: #{tpu_custom_call.1} parent=27 // pred_check_branch
          %259 = sbr.rel (%p257) target = $region32
        $region31: #{tpu_custom_call.1} parent=27 // pred_region
          %261 = vsyncadd %s248, 0
          %s262 = smul.addr %s21, 4
          %s263 = scalar_lea.hbm %s2, %s262
          %s264 = sshll.u32 %s251, 4
          %s265 = int_to_ptr.vmem [resolvable:$true] %s264
          %s266 = sshll.u32 %s263, 4
          %s267 = int_to_ptr.hbm [resolvable:$true] %s266
          %272 = dma.vmem_to_hbm [thread:$0]  %s265, 128, %s267, %s248, 64, 192, 4
        $region32: #{tpu_custom_call.1} parent=27 // pred_fallthru
          _
        // Predicated region
        $region33: #{tpu_custom_call.1} parent=27 // pred_check
          %p273 = pneg %p112
        $region34: #{tpu_custom_call.1} parent=27 // pred_check_branch
          %275 = sbr.rel (%p273) target = $region36
        $region35: #{tpu_custom_call.1} parent=27 // pred_region
          %277 = vsyncadd %s253, 0
          %s278 = smul.addr %s21, 4
          %s279 = scalar_lea.hbm %s3, %s278
          %s280 = sshll.u32 %s256, 4
          %s281 = int_to_ptr.vmem [resolvable:$true] %s280
          %s282 = sshll.u32 %s279, 4
          %s283 = int_to_ptr.hbm [resolvable:$true] %s282
          %288 = dma.vmem_to_hbm [thread:$0]  %s281, 256, %s283, %s253, 64, 192, 4
        $region36: #{tpu_custom_call.1} parent=27 // pred_fallthru
          _
      $region28: #{tpu_custom_call.1} parent=5 // pred_fallthru
        _
      %p289 = scmp.le.s32.totalorder 2, %s16
      // Predicated region
      $region37: #{tpu_custom_call.1} parent=5 // pred_check
        %p290 = pneg %p289
      $region38: #{tpu_custom_call.1} parent=5 // pred_check_branch
        %292 = sbr.rel (%p290) target = $region40
      $region39: #{tpu_custom_call.1} parent=5 // pred_region
        %s293 = ssub.s32 %s16, 2
        // Predicated region
        $region41: #{tpu_custom_call.1} parent=39 // pred_check
          %p294 = pneg %p92
        $region42: #{tpu_custom_call.1} parent=39 // pred_check_branch
          %296 = sbr.rel (%p294) target = $region44
        $region43: #{tpu_custom_call.1} parent=39 // pred_region
          %s297 = sand.u32 %s77, 1
          %s298 = scalar_lea.sflag [#allocation3], %s297
          %s299 = sand.u32 %s77, 1
          %s300 = smul.addr %s299, 8
          %s301 = scalar_lea.vmem [#allocation2], %s300
          %303 = dma.done %s298, 128
        $region44: #{tpu_custom_call.1} parent=39 // pred_fallthru
          _
        // Predicated region
        $region45: #{tpu_custom_call.1} parent=39 // pred_check
          %p304 = pneg %p118
        $region46: #{tpu_custom_call.1} parent=39 // pred_check_branch
          %306 = sbr.rel (%p304) target = $region48
        $region47: #{tpu_custom_call.1} parent=39 // pred_region
          %s307 = sand.u32 %s103, 1
          %s308 = scalar_lea.sflag [#allocation5], %s307
          %s309 = sand.u32 %s103, 1
          %s310 = smul.addr %s309, 16
          %s311 = scalar_lea.vmem [#allocation4], %s310
          %313 = dma.done %s308, 256
        $region48: #{tpu_custom_call.1} parent=39 // pred_fallthru
          _
      $region40: #{tpu_custom_call.1} parent=5 // pred_fallthru
        _
    $region6: #{tpu_custom_call.1} parent=1 // loop_footer
      %s20 = sadd.s32 1, %s16
    $region7: #{tpu_custom_call.1} parent=1 // loop_footer_branch
      %15 = sbr.rel target = $region3
    $region8: #{tpu_custom_call.1} parent=1 // loop_exit
      _
    %314 = vsyncpa [#allocation3], 1
    %s315 = scalar_lea.sflag [#allocation3], 1
    %316 = vsyncpa %s315, 1
    %317 = vsyncpa [#allocation5], 1
    %s318 = scalar_lea.sflag [#allocation5], 1
    %319 = vsyncpa %s318, 1

</llo_original>
